<compile_context>
chip_gen: v7x
topology: tpu7x:2x2x1
jax: 0.10.0
libtpu: 0.0.40
codegen_flags: <defaults>
</compile_context>

<pallas_src>
import jax
import jax.numpy as jnp
from jax.experimental import pallas as pl
from jax.experimental.pallas import tpu as pltpu

hidden_size = 48
input_size = 24
output_size = 6
hidden_layers = 1


def mlp_kernel(x_ref, w0_ref, b0_ref, w1_ref, b1_ref, w2_ref, b2_ref, o_ref):
    # Layer 0: Linear(input, hidden) + ReLU.  bf16 MXU operands, f32 accumulate,
    # bias-add / ReLU in f32.
    h = jnp.dot(x_ref[...], w0_ref[...],
                preferred_element_type=jnp.float32) + b0_ref[...]
    h = jnp.maximum(h, 0.0)
    # Layer 1: Linear(hidden, hidden) + ReLU.
    h = jnp.dot(h.astype(jnp.bfloat16), w1_ref[...],
                preferred_element_type=jnp.float32) + b1_ref[...]
    h = jnp.maximum(h, 0.0)
    # Output layer: Linear(hidden, output), no activation.  Output stays f32.
    o_ref[...] = jnp.dot(h.astype(jnp.bfloat16), w2_ref[...],
                         preferred_element_type=jnp.float32) + b2_ref[...]


def _round_up(n, m):
    return ((n + m - 1) // m) * m


def continuous_policy_network(x, params, *, max_tile=1024):
    """x: (B, input_size) f32. params: [(W_t, b), ...], W_t (in,out) bf16, b (1,out) f32."""
    B = x.shape[0]
    (w0, b0), (w1, b1), (w2, b2) = params

    # Batch tile: multiple of 16 (bf16 sublane packing), capped by the padded batch.
    tb = min(max_tile, _round_up(B, 16))
    b_pad = _round_up(B, tb)

    x = x.astype(jnp.bfloat16)
    if b_pad != B:
        x = jnp.pad(x, ((0, b_pad - B), (0, 0)))

    grid = (b_pad // tb,)

    def const_spec(shape):
        return pl.BlockSpec(shape, lambda i: (0,) * len(shape))

    flops = 2 * b_pad * (input_size * hidden_size
                         + hidden_size * hidden_size
                         + hidden_size * output_size)
    bytes_accessed = (b_pad * input_size * 2            # x tiles (bf16)
                      + b_pad * output_size * 4         # output (f32)
                      + sum(int(w.size) * 2 + int(b.size) * 4 for (w, b) in params))
    cost = pl.CostEstimate(flops=flops, transcendentals=0,
                           bytes_accessed=bytes_accessed)

    out = pl.pallas_call(
        mlp_kernel,
        out_shape=jax.ShapeDtypeStruct((b_pad, output_size), jnp.float32),
        grid=grid,
        in_specs=[
            pl.BlockSpec((tb, input_size), lambda i: (i, 0)),   # x: batch-tiled
            const_spec(w0.shape), const_spec(b0.shape),         # weights/biases resident
            const_spec(w1.shape), const_spec(b1.shape),
            const_spec(w2.shape), const_spec(b2.shape),
        ],
        out_specs=pl.BlockSpec((tb, output_size), lambda i: (i, 0)),
        compiler_params=pltpu.CompilerParams(
            dimension_semantics=("parallel",)),                 # megacore on v7x
        cost_estimate=cost,
    )(x, w0, b0, w1, b1, w2, b2)
    return out[:B]


def init_params(key):
    """Mirrors the module: weights ~ N(0, std=0.25); biases keep the PyTorch Linear
    default U(-1/sqrt(fan_in), 1/sqrt(fan_in)).  Weights stored (in, out) in bf16."""
    dims = [input_size] + [hidden_size] * (hidden_layers + 1) + [output_size]
    params = []
    for i in range(len(dims) - 1):
        fan_in, fan_out = dims[i], dims[i + 1]
        key, kw, kb = jax.random.split(key, 3)
        w = 0.25 * jax.random.normal(kw, (fan_out, fan_in), dtype=jnp.float32)
        bound = 1.0 / (fan_in ** 0.5)
        b = jax.random.uniform(kb, (fan_out,), dtype=jnp.float32,
                               minval=-bound, maxval=bound)
        params.append((w.T.astype(jnp.bfloat16), b.reshape(1, fan_out)))
    return params


def reference_forward(x, params):
    """Pure-JAX reference doing the same arithmetic (bf16 operands, f32 accumulate)."""
    h = x.astype(jnp.bfloat16)
    for (w, b) in params[:-1]:
        h = jnp.maximum(
            jnp.dot(h, w, preferred_element_type=jnp.float32) + b, 0.0
        ).astype(jnp.bfloat16)
    w, b = params[-1]
    return jnp.dot(h, w, preferred_element_type=jnp.float32) + b


if __name__ == "__main__":
    key = jax.random.PRNGKey(0)
    key, kx1, kx2 = jax.random.split(key, 3)
    params = init_params(key)

    # Small-batch case (single tile: 4 rows padded to 16).
    B1 = 4
    x1 = jax.random.normal(kx1, (B1, input_size), dtype=jnp.float32)
    out1 = jax.block_until_ready(continuous_policy_network(x1, params))
    ref1 = reference_forward(x1, params)
    assert out1.shape == (B1, output_size)
    assert jnp.allclose(out1, ref1, atol=1e-2, rtol=1e-2), "mismatch vs JAX reference (B=4)"

    # Multi-tile case (exercises the batch grid + padding: 300 -> 384, tb=128, 3 steps).
    B2 = 300
    x2 = jax.random.normal(kx2, (B2, input_size), dtype=jnp.float32)
    out2 = jax.block_until_ready(continuous_policy_network(x2, params, max_tile=128))
    ref2 = reference_forward(x2, params)
    assert out2.shape == (B2, output_size)
    assert jnp.allclose(out2, ref2, atol=1e-2, rtol=1e-2), "mismatch vs JAX reference (B=300)"

    print("KERNEL_OK")
</pallas_src>

<mosaic_0001>
module attributes {stable_mosaic.version = 11 : i64} {
  func.func @mlp_kernel(%arg0: i32, %arg1: memref<16x24xbf16, #tpu.memory_space<vmem>>, %arg2: memref<24x48xbf16, #tpu.memory_space<vmem>>, %arg3: memref<1x48xf32, #tpu.memory_space<vmem>>, %arg4: memref<48x48xbf16, #tpu.memory_space<vmem>>, %arg5: memref<1x48xf32, #tpu.memory_space<vmem>>, %arg6: memref<48x6xbf16, #tpu.memory_space<vmem>>, %arg7: memref<1x6xf32, #tpu.memory_space<vmem>>, %arg8: memref<16x6xf32, #tpu.memory_space<vmem>>) attributes {dimension_semantics = [#tpu.dimension_semantics<parallel>], iteration_bounds = array<i64: 1>, scalar_prefetch = 0 : i64, scratch_operands = 0 : i64, tpu.core_type = #tpu.core_type<tc>, window_params = [{transform_indices = @transform_0, window_bounds = array<i64: 16, 24>}, {pipeline_mode = #tpu.pipeline_mode<synchronous>, transform_indices = @transform_1, window_bounds = array<i64: 24, 48>}, {pipeline_mode = #tpu.pipeline_mode<synchronous>, transform_indices = @transform_2, window_bounds = array<i64: 1, 48>}, {pipeline_mode = #tpu.pipeline_mode<synchronous>, transform_indices = @transform_3, window_bounds = array<i64: 48, 48>}, {pipeline_mode = #tpu.pipeline_mode<synchronous>, transform_indices = @transform_4, window_bounds = array<i64: 1, 48>}, {pipeline_mode = #tpu.pipeline_mode<synchronous>, transform_indices = @transform_5, window_bounds = array<i64: 48, 6>}, {pipeline_mode = #tpu.pipeline_mode<synchronous>, transform_indices = @transform_6, window_bounds = array<i64: 1, 6>}, {transform_indices = @transform_7, window_bounds = array<i64: 16, 6>}]} {
    %c0 = arith.constant 0 : index
    %c0_0 = arith.constant 0 : index
    %0 = vector.load %arg1[%c0, %c0_0] : memref<16x24xbf16, #tpu.memory_space<vmem>>, vector<16x24xbf16>
    %c0_1 = arith.constant 0 : index
    %c0_2 = arith.constant 0 : index
    %1 = vector.load %arg2[%c0_1, %c0_2] : memref<24x48xbf16, #tpu.memory_space<vmem>>, vector<24x48xbf16>
    %cst = arith.constant dense<0.000000e+00> : vector<16x48xf32>
    %2 = tpu.matmul %0, %1, %cst {dimension_numbers = #tpu.dot_dimension_numbers<[1], [0], [0], [1], [0, 0, 1, 1], [], []>} : vector<16x24xbf16>, vector<24x48xbf16>, vector<16x48xf32> -> vector<16x48xf32>
    %c0_3 = arith.constant 0 : index
    %c0_4 = arith.constant 0 : index
    %3 = vector.load %arg3[%c0_3, %c0_4] : memref<1x48xf32, #tpu.memory_space<vmem>>, vector<1x48xf32>
    %4 = vector.broadcast %3 : vector<1x48xf32> to vector<16x48xf32>
    %5 = arith.addf %2, %4 : vector<16x48xf32>
    %cst_5 = arith.constant 0.000000e+00 : f32
    %6 = vector.broadcast %cst_5 : f32 to vector<16x48xf32>
    %7 = arith.maximumf %5, %6 : vector<16x48xf32>
    %8 = arith.truncf %7 : vector<16x48xf32> to vector<16x48xbf16>
    %c0_6 = arith.constant 0 : index
    %c0_7 = arith.constant 0 : index
    %9 = vector.load %arg4[%c0_6, %c0_7] : memref<48x48xbf16, #tpu.memory_space<vmem>>, vector<48x48xbf16>
    %cst_8 = arith.constant dense<0.000000e+00> : vector<16x48xf32>
    %10 = tpu.matmul %8, %9, %cst_8 {dimension_numbers = #tpu.dot_dimension_numbers<[1], [0], [0], [1], [0, 0, 1, 1], [], []>} : vector<16x48xbf16>, vector<48x48xbf16>, vector<16x48xf32> -> vector<16x48xf32>
    %c0_9 = arith.constant 0 : index
    %c0_10 = arith.constant 0 : index
    %11 = vector.load %arg5[%c0_9, %c0_10] : memref<1x48xf32, #tpu.memory_space<vmem>>, vector<1x48xf32>
    %12 = vector.broadcast %11 : vector<1x48xf32> to vector<16x48xf32>
    %13 = arith.addf %10, %12 : vector<16x48xf32>
    %cst_11 = arith.constant 0.000000e+00 : f32
    %14 = vector.broadcast %cst_11 : f32 to vector<16x48xf32>
    %15 = arith.maximumf %13, %14 : vector<16x48xf32>
    %16 = arith.truncf %15 : vector<16x48xf32> to vector<16x48xbf16>
    %c0_12 = arith.constant 0 : index
    %c0_13 = arith.constant 0 : index
    %17 = vector.load %arg6[%c0_12, %c0_13] : memref<48x6xbf16, #tpu.memory_space<vmem>>, vector<48x6xbf16>
    %cst_14 = arith.constant dense<0.000000e+00> : vector<16x6xf32>
    %18 = tpu.matmul %16, %17, %cst_14 {dimension_numbers = #tpu.dot_dimension_numbers<[1], [0], [0], [1], [0, 0, 1, 1], [], []>} : vector<16x48xbf16>, vector<48x6xbf16>, vector<16x6xf32> -> vector<16x6xf32>
    %c0_15 = arith.constant 0 : index
    %c0_16 = arith.constant 0 : index
    %19 = vector.load %arg7[%c0_15, %c0_16] : memref<1x6xf32, #tpu.memory_space<vmem>>, vector<1x6xf32>
    %20 = vector.broadcast %19 : vector<1x6xf32> to vector<16x6xf32>
    %21 = arith.addf %18, %20 : vector<16x6xf32>
    %c0_17 = arith.constant 0 : index
    %c0_18 = arith.constant 0 : index
    %22 = vector.load %arg8[%c0_17, %c0_18] : memref<16x6xf32, #tpu.memory_space<vmem>>, vector<16x6xf32>
    tpu.vector_store %arg8[%c0_17, %c0_18], %21 {strides = array<i32>} : memref<16x6xf32, #tpu.memory_space<vmem>>, vector<16x6xf32>,
    return
  }
  func.func @transform_0(%arg0: i32) -> (i32, i32) {
    %c0_i32 = arith.constant 0 : i32
    %c0_i32_0 = arith.constant 0 : i32
    return %arg0, %c0_i32 : i32, i32
  }
  func.func @transform_1(%arg0: i32) -> (i32, i32) {
    %c0_i32 = arith.constant 0 : i32
    %c0_i32_0 = arith.constant 0 : i32
    %c0_i32_1 = arith.constant 0 : i32
    return %c0_i32, %c0_i32_0 : i32, i32
  }
  func.func @transform_2(%arg0: i32) -> (i32, i32) {
    %c0_i32 = arith.constant 0 : i32
    %c0_i32_0 = arith.constant 0 : i32
    %c0_i32_1 = arith.constant 0 : i32
    return %c0_i32, %c0_i32_0 : i32, i32
  }
  func.func @transform_3(%arg0: i32) -> (i32, i32) {
    %c0_i32 = arith.constant 0 : i32
    %c0_i32_0 = arith.constant 0 : i32
    %c0_i32_1 = arith.constant 0 : i32
    return %c0_i32, %c0_i32_0 : i32, i32
  }
  func.func @transform_4(%arg0: i32) -> (i32, i32) {
    %c0_i32 = arith.constant 0 : i32
    %c0_i32_0 = arith.constant 0 : i32
    %c0_i32_1 = arith.constant 0 : i32
    return %c0_i32, %c0_i32_0 : i32, i32
  }
  func.func @transform_5(%arg0: i32) -> (i32, i32) {
    %c0_i32 = arith.constant 0 : i32
    %c0_i32_0 = arith.constant 0 : i32
    %c0_i32_1 = arith.constant 0 : i32
    return %c0_i32, %c0_i32_0 : i32, i32
  }
  func.func @transform_6(%arg0: i32) -> (i32, i32) {
    %c0_i32 = arith.constant 0 : i32
    %c0_i32_0 = arith.constant 0 : i32
    %c0_i32_1 = arith.constant 0 : i32
    return %c0_i32, %c0_i32_0 : i32, i32
  }
  func.func @transform_7(%arg0: i32) -> (i32, i32) {
    %c0_i32 = arith.constant 0 : i32
    %c0_i32_0 = arith.constant 0 : i32
    return %arg0, %c0_i32 : i32, i32
  }
}

</mosaic_0001>

<llo_original>
// kernel: tpu_custom_call.1
$region0: #{tpu_custom_call.1}
  #allocation0 [shape = 'u32[]', space=smem, size = 0x4, offset = 0x4, fixed_abs, tag = 'smem constant byte address 0x4 - core index']
  #allocation1 [shape = 'u32[144,128]{1,0:T(1,128)}', space=vmem, size = 0x12000, scoped, tag = 'internal scratch']
  %s0 = inlined_call_operand.hbm [shape: bf16[16,24], index: 0, kind: input, shape index: {}]
  %s1 = inlined_call_operand.vmem [shape: bf16[24,48], index: 1, kind: input, shape index: {}]
  %s2 = inlined_call_operand.vmem [shape: f32[1,48], index: 2, kind: input, shape index: {}]
  %s3 = inlined_call_operand.vmem [shape: bf16[48,48], index: 3, kind: input, shape index: {}]
  %s4 = inlined_call_operand.vmem [shape: f32[1,48], index: 4, kind: input, shape index: {}]
  %s5 = inlined_call_operand.vmem [shape: bf16[48,6], index: 5, kind: input, shape index: {}]
  %s6 = inlined_call_operand.vmem [shape: f32[1,6], index: 6, kind: input, shape index: {}]
  %s7 = inlined_call_operand.vmem [shape: f32[16,6], index: 7, kind: output, shape index: {}]
  %s8 = sld [smem:[#allocation0]]
  $region42: #{tpu_custom_call.1} parent=0
    _
  %s10 = ssub.s32 1, %s8
  %s11 = scalar_select 0, %s10, %s8
  $region1: #{tpu_custom_call.1} parent=0
    #allocation2 [shape = 'u8[4096]{0}', space=vmem, size = 0x1000, scoped, tag = 'input window, operand 0, single buffered']
    #allocation3 [shape = 's32[1]{0}', space=sflag, size = 0x4, scoped, tag = 'scoped memory for tpu_custom_call.1']
    %12 = vsyncpa [#allocation3], 0
    // Predicated region
    $region2: #{tpu_custom_call.1} parent=1 // pred_check
      _
    $region3: #{tpu_custom_call.1} parent=1 // pred_check_branch
      %14 = sbr.rel (0) target = $region5
    $region4: #{tpu_custom_call.1} parent=1 // pred_region
      %s16 = ssub.s32 128, 128
      %17 = vsyncadd [#allocation3], %s16
      %s18 = sshll.u32 [#allocation2], 4
      %s19 = int_to_ptr.vmem [resolvable:$true] %s18
      %24 = dma.hbm_to_vmem [thread:$0]  %s0, 128, %s19, [#allocation3], 64, 64, 4
    $region5: #{tpu_custom_call.1} parent=1 // pred_fallthru
      _
    // Predicated region
    $region6: #{tpu_custom_call.1} parent=1 // pred_check
      _
    $region7: #{tpu_custom_call.1} parent=1 // pred_check_branch
      %26 = sbr.rel (0) target = $region9
    $region8: #{tpu_custom_call.1} parent=1 // pred_region
      _
    $region9: #{tpu_custom_call.1} parent=1 // pred_fallthru
      _
    // Predicated region
    $region10: #{tpu_custom_call.1} parent=1 // pred_check
      _
    $region11: #{tpu_custom_call.1} parent=1 // pred_check_branch
      %28 = sbr.rel (0) target = $region13
    $region12: #{tpu_custom_call.1} parent=1 // pred_region
      _
    $region13: #{tpu_custom_call.1} parent=1 // pred_fallthru
      _
    // Predicated region
    $region14: #{tpu_custom_call.1} parent=1 // pred_check
      _
    $region15: #{tpu_custom_call.1} parent=1 // pred_check_branch
      %30 = sbr.rel (0) target = $region17
    $region16: #{tpu_custom_call.1} parent=1 // pred_region
      _
    $region17: #{tpu_custom_call.1} parent=1 // pred_fallthru
      _
    // Predicated region
    $region18: #{tpu_custom_call.1} parent=1 // pred_check
      _
    $region19: #{tpu_custom_call.1} parent=1 // pred_check_branch
      %32 = sbr.rel (0) target = $region21
    $region20: #{tpu_custom_call.1} parent=1 // pred_region
      _
    $region21: #{tpu_custom_call.1} parent=1 // pred_fallthru
      _
    // Predicated region
    $region22: #{tpu_custom_call.1} parent=1 // pred_check
      _
    $region23: #{tpu_custom_call.1} parent=1 // pred_check_branch
      %34 = sbr.rel (0) target = $region25
    $region24: #{tpu_custom_call.1} parent=1 // pred_region
      _
    $region25: #{tpu_custom_call.1} parent=1 // pred_fallthru
      _
    // Predicated region
    $region26: #{tpu_custom_call.1} parent=1 // pred_check
      _
    $region27: #{tpu_custom_call.1} parent=1 // pred_check_branch
      %36 = sbr.rel (0) target = $region29
    $region28: #{tpu_custom_call.1} parent=1 // pred_region
      _
    $region29: #{tpu_custom_call.1} parent=1 // pred_fallthru
      _
    // Predicated region
    $region30: #{tpu_custom_call.1} parent=1 // pred_check
      _
    $region31: #{tpu_custom_call.1} parent=1 // pred_check_branch
      %38 = sbr.rel (0) target = $region33
    $region32: #{tpu_custom_call.1} parent=1 // pred_region
      %39 = dma.done [#allocation3], 128
    $region33: #{tpu_custom_call.1} parent=1 // pred_fallthru
      _
    %v41 = vld [vmem:[#allocation2] sm:$0xf]
    %v42 = vld [vmem:[#allocation2 + $0x4] sm:$0xf]
    %v43 = vld [vmem:[%s1] sm:$0xf]
    %v44 = vld [vmem:[%s1 + $0x4] sm:$0xf]
    %v45 = vld [vmem:[%s1 + $0x8] sm:$0xf]
    %v46 = vld [vmem:[%s2] sm:$0x1]
    %v48 = vlaneseq
    %v49 = vshrl.u32 %v48, 7
    %v50 = vsub.s32 0, %v49
    %v51 = vrot.slane %v46, %v50
    %v55 = vunpack.c.l.b16 %v41
    %v56 = vunpack.c.l.b16 %v42
    %v57 = vpack.c.b16 %v56, %v55
    %v61 = vunpack.c.l.b16 %v43
    %v62 = vunpack.c.l.b16 %v44
    %v63 = vunpack.c.l.b16 %v45
    %v64 = vpack.c.b16 %v62, %v61
    %v65 = vpack.c.b16 %v63, %v63
    %vm67 = vcmask 195584
    %v69 = vsel %vm67, %v57, 0
    %vm71 = vcmask 1043456
    %v73 = vsel %vm71, %v65, 0
    %75 = vmatprep.subr.bf16.mxu0 0
    %76 = vmatpush1.bf16.msra.mxu0 %v64
    %77 = vmatprep.subr.bf16.mxu0 0
    %78 = vmatpush1.bf16.msra.mxu0 %v73
    %79 = vmatprep.subr.bf16.mxu0 0
    %80 = vmatpush1.bf16.msra.mxu0 0
    %81 = vmatprep.subr.bf16.mxu0 0
    %82 = vmatpush1.bf16.msra.mxu0 0
    %83 = vmatprep.subr.bf16.mxu0 0
    %84 = vmatpush1.bf16.msra.mxu0 0
    %85 = vmatprep.subr.bf16.mxu0 0
    %86 = vmatpush1.bf16.msra.mxu0 0
    %87 = vmatprep.subr.bf16.mxu0 0
    %88 = vmatpush1.bf16.msra.mxu0 0
    %89 = vmatprep.subr.bf16.mxu0 0
    %90 = vmatpush1.bf16.msra.mxu0 0
    %91 = vmatprep.subr.bf16.mxu0 0
    %92 = vmatpush1.bf16.msra.mxu0 0
    %93 = vmatprep.subr.bf16.mxu0 0
    %94 = vmatpush1.bf16.msra.mxu0 0
    %95 = vmatprep.subr.bf16.mxu0 0
    %96 = vmatpush1.bf16.msra.mxu0 0
    %97 = vmatprep.subr.bf16.mxu0 0
    %98 = vmatpush1.bf16.msra.mxu0 0
    %99 = vmatprep.subr.bf16.mxu0 0
    %100 = vmatpush1.bf16.msra.mxu0 0
    %101 = vmatprep.subr.bf16.mxu0 0
    %102 = vmatpush1.bf16.msra.mxu0 0
    %103 = vmatprep.subr.bf16.mxu0 0
    %104 = vmatpush1.bf16.msra.mxu0 0
    %105 = vmatprep.subr.bf16.mxu0 0
    %106 = vmatpush1.bf16.msra.mxu0 0
    %107 = vmatprep.mubr.bf16.mxu0 0
    %108 = vmatmul.mubr.bf16.gmra.mrb[0].mxu0 %v69
    %v109 = vpop.f32.mrb[0].mxu0
    %v110 = vadd.f32 %v51, %v109
    %v111 = vpop.f32.mrb[0].mxu0
    %v112 = vpop.f32.mrb[0].mxu0
    %v113 = vadd.f32 %v51, %v112
    %v114 = vpop.f32.mrb[0].mxu0
    %115 = vdwg.mxu0
    %v116 = vmax.f32 %v110, 0.0
    %v117 = vmax.f32 %v113, 0.0
    %v118 = vpack.c.bf16 %v117, %v116
    %v119 = vld [vmem:[%s3] sm:$0xf]
    %v120 = vld [vmem:[%s3 + $0x4] sm:$0xf]
    %v121 = vld [vmem:[%s3 + $0x8] sm:$0xf]
    %v122 = vld [vmem:[%s3 + $0xc] sm:$0xf]
    %v123 = vld [vmem:[%s3 + $0x10] sm:$0xf]
    %v124 = vld [vmem:[%s3 + $0x14] sm:$0xf]
    %v125 = vld [vmem:[%s4] sm:$0x1]
    %v127 = vlaneseq
    %v128 = vshrl.u32 %v127, 7
    %v129 = vsub.s32 0, %v128
    %v130 = vrot.slane %v125, %v129
    %v138 = vunpack.c.l.b16 %v119
    %v139 = vunpack.c.l.b16 %v120
    %v140 = vunpack.c.l.b16 %v121
    %v141 = vunpack.c.l.b16 %v122
    %v142 = vunpack.c.l.b16 %v123
    %v143 = vunpack.c.l.b16 %v124
    %v144 = vpack.c.b16 %v139, %v138
    %v145 = vpack.c.b16 %v141, %v140
    %v146 = vpack.c.b16 %v143, %v142
    %vm150 = vcmask 392192
    %v152 = vsel %vm150, %v118, 0
    %154 = vmatprep.subr.bf16.mxu0 0
    %155 = vmatpush1.bf16.msra.mxu0 %v144
    %156 = vmatprep.subr.bf16.mxu0 0
    %157 = vmatpush1.bf16.msra.mxu0 %v145
    %158 = vmatprep.subr.bf16.mxu0 0
    %159 = vmatpush1.bf16.msra.mxu0 %v146
    %160 = vmatprep.subr.bf16.mxu0 0
    %161 = vmatpush1.bf16.msra.mxu0 0
    %162 = vmatprep.subr.bf16.mxu0 0
    %163 = vmatpush1.bf16.msra.mxu0 0
    %164 = vmatprep.subr.bf16.mxu0 0
    %165 = vmatpush1.bf16.msra.mxu0 0
    %166 = vmatprep.subr.bf16.mxu0 0
    %167 = vmatpush1.bf16.msra.mxu0 0
    %168 = vmatprep.subr.bf16.mxu0 0
    %169 = vmatpush1.bf16.msra.mxu0 0
    %170 = vmatprep.subr.bf16.mxu0 0
    %171 = vmatpush1.bf16.msra.mxu0 0
    %172 = vmatprep.subr.bf16.mxu0 0
    %173 = vmatpush1.bf16.msra.mxu0 0
    %174 = vmatprep.subr.bf16.mxu0 0
    %175 = vmatpush1.bf16.msra.mxu0 0
    %176 = vmatprep.subr.bf16.mxu0 0
    %177 = vmatpush1.bf16.msra.mxu0 0
    %178 = vmatprep.subr.bf16.mxu0 0
    %179 = vmatpush1.bf16.msra.mxu0 0
    %180 = vmatprep.subr.bf16.mxu0 0
    %181 = vmatpush1.bf16.msra.mxu0 0
    %182 = vmatprep.subr.bf16.mxu0 0
    %183 = vmatpush1.bf16.msra.mxu0 0
    %184 = vmatprep.subr.bf16.mxu0 0
    %185 = vmatpush1.bf16.msra.mxu0 0
    %186 = vmatprep.mubr.bf16.mxu0 0
    %187 = vmatmul.mubr.bf16.gmra.mrb[0].mxu0 %v152
    %v188 = vpop.f32.mrb[0].mxu0
    %v189 = vadd.f32 %v130, %v188
    %v190 = vpop.f32.mrb[0].mxu0
    %v191 = vpop.f32.mrb[0].mxu0
    %v192 = vadd.f32 %v130, %v191
    %v193 = vpop.f32.mrb[0].mxu0
    %194 = vdwg.mxu0
    %v195 = vmax.f32 %v189, 0.0
    %v196 = vmax.f32 %v192, 0.0
    %v197 = vpack.c.bf16 %v196, %v195
    %v198 = vld [vmem:[%s5] sm:$0xf]
    %v199 = vld [vmem:[%s5 + $0x4] sm:$0xf]
    %v200 = vld [vmem:[%s5 + $0x8] sm:$0xf]
    %v201 = vld [vmem:[%s5 + $0xc] sm:$0xf]
    %v202 = vld [vmem:[%s5 + $0x10] sm:$0xf]
    %v203 = vld [vmem:[%s5 + $0x14] sm:$0xf]
    %v204 = vld [vmem:[%s6] sm:$0x1]
    %v206 = vlaneseq
    %v207 = vshrl.u32 %v206, 7
    %v208 = vsub.s32 0, %v207
    %v209 = vrot.slane %v204, %v208
    %v217 = vunpack.c.l.b16 %v198
    %v218 = vunpack.c.l.b16 %v199
    %v219 = vunpack.c.l.b16 %v200
    %v220 = vunpack.c.l.b16 %v201
    %v221 = vunpack.c.l.b16 %v202
    %v222 = vunpack.c.l.b16 %v203
    %v223 = vpack.c.b16 %v218, %v217
    %v224 = vpack.c.b16 %v220, %v219
    %v225 = vpack.c.b16 %v222, %v221
    %v230 = vsel %vm150, %v197, 0
    %232 = vmatprep.subr.bf16.mxu0 0
    %233 = vmatpush1.bf16.msra.mxu0 %v223
    %234 = vmatprep.subr.bf16.mxu0 0
    %235 = vmatpush1.bf16.msra.mxu0 %v224
    %236 = vmatprep.subr.bf16.mxu0 0
    %237 = vmatpush1.bf16.msra.mxu0 %v225
    %238 = vmatprep.subr.bf16.mxu0 0
    %239 = vmatpush1.bf16.msra.mxu0 0
    %240 = vmatprep.subr.bf16.mxu0 0
    %241 = vmatpush1.bf16.msra.mxu0 0
    %242 = vmatprep.subr.bf16.mxu0 0
    %243 = vmatpush1.bf16.msra.mxu0 0
    %244 = vmatprep.subr.bf16.mxu0 0
    %245 = vmatpush1.bf16.msra.mxu0 0
    %246 = vmatprep.subr.bf16.mxu0 0
    %247 = vmatpush1.bf16.msra.mxu0 0
    %248 = vmatprep.subr.bf16.mxu0 0
    %249 = vmatpush1.bf16.msra.mxu0 0
    %250 = vmatprep.subr.bf16.mxu0 0
    %251 = vmatpush1.bf16.msra.mxu0 0
    %252 = vmatprep.subr.bf16.mxu0 0
    %253 = vmatpush1.bf16.msra.mxu0 0
    %254 = vmatprep.subr.bf16.mxu0 0
    %255 = vmatpush1.bf16.msra.mxu0 0
    %256 = vmatprep.subr.bf16.mxu0 0
    %257 = vmatpush1.bf16.msra.mxu0 0
    %258 = vmatprep.subr.bf16.mxu0 0
    %259 = vmatpush1.bf16.msra.mxu0 0
    %260 = vmatprep.subr.bf16.mxu0 0
    %261 = vmatpush1.bf16.msra.mxu0 0
    %262 = vmatprep.subr.bf16.mxu0 0
    %263 = vmatpush1.bf16.msra.mxu0 0
    %264 = vmatprep.mubr.bf16.mxu0 0
    %265 = vmatmul.mubr.bf16.gmra.mrb[0].mxu0 %v230
    %v266 = vpop.f32.mrb[0].mxu0
    %v267 = vadd.f32 %v209, %v266
    %v268 = vpop.f32.mrb[0].mxu0
    %v269 = vpop.f32.mrb[0].mxu0
    %v270 = vadd.f32 %v209, %v269
    %v271 = vpop.f32.mrb[0].mxu0
    %272 = vdwg.mxu0
    %vm273 = vcmask 48128
    %274 = vst.msk [vmem:[%s7] sm:$0xff] %vm273, %v267
    %275 = vst.msk [vmem:[%s7 + $0x8] sm:$0xff] %vm273, %v270
    // Predicated region
    $region34: #{tpu_custom_call.1} parent=1 // pred_check
      _
    $region35: #{tpu_custom_call.1} parent=1 // pred_check_branch
      %277 = sbr.rel (0) target = $region37
    $region36: #{tpu_custom_call.1} parent=1 // pred_region
      _
    $region37: #{tpu_custom_call.1} parent=1 // pred_fallthru
      _
    // Predicated region
    $region38: #{tpu_custom_call.1} parent=1 // pred_check
      _
    $region39: #{tpu_custom_call.1} parent=1 // pred_check_branch
      %279 = sbr.rel (0) target = $region41
    $region40: #{tpu_custom_call.1} parent=1 // pred_region
      _
    $region41: #{tpu_custom_call.1} parent=1 // pred_fallthru
      _
    %280 = vsyncpa [#allocation3], 1

</llo_original>
